<compile_context>
chip_gen: v7x
topology: tpu7x:2x2x1
jax: 0.10.0
libtpu: 0.0.40
codegen_flags: <defaults>
</compile_context>

<pallas_src>
import math

import jax
import jax.numpy as jnp
from jax.experimental import pallas as pl
from jax.experimental.pallas import tpu as pltpu


def _round_up(a: int, b: int) -> int:
    return ((a + b - 1) // b) * b


def _cdiv(a: int, b: int) -> int:
    return (a + b - 1) // b


def _pad2d(a, rows, cols):
    """Zero-pad a 2-D array up to (rows, cols); no-op if already that shape."""
    r, c = a.shape
    if (r, c) == (rows, cols):
        return a
    return jnp.zeros((rows, cols), a.dtype).at[:r, :c].set(a)


# -----------------------------------------------------------------------------
# Kernels
# -----------------------------------------------------------------------------
def _expert_kernel_resident(x_ref, w1_ref, b1_ref, w2_ref, b2_ref, o_ref):
    """Both (padded) weight matrices are VMEM-resident; 1-D grid over row tiles."""
    x = x_ref[...].astype(w1_ref.dtype)
    h = jnp.dot(x, w1_ref[...], preferred_element_type=jnp.float32)
    h = jnp.maximum(h + b1_ref[...], 0.0)                       # b1 already f32
    y = jnp.dot(h.astype(w2_ref.dtype), w2_ref[...],
                preferred_element_type=jnp.float32)
    y = jnp.maximum(y + b2_ref[...], 0.0)
    o_ref[...] = y.astype(o_ref.dtype)
    # TODO(synk): dropout with p > 0 in training mode is not implemented; the
    # module default p=0.0 makes Dropout the identity in forward.


def _expert_kernel_streamed(x_ref, w1_ref, b1_ref, w2_ref, b2_ref, o_ref, acc_ref):
    """Hidden dimension streamed in tiles (weights too large to keep resident,
    e.g. under v7x's 64 MiB VMEM); f32 accumulator kept in VMEM scratch."""
    k = pl.program_id(1)

    @pl.when(k == 0)
    def _():
        acc_ref[...] = jnp.zeros_like(acc_ref)

    x = x_ref[...].astype(w1_ref.dtype)
    h = jnp.dot(x, w1_ref[...], preferred_element_type=jnp.float32)
    h = jnp.maximum(h + b1_ref[...], 0.0)                       # per-hidden-unit ReLU
    acc_ref[...] += jnp.dot(h.astype(w2_ref.dtype), w2_ref[...],
                            preferred_element_type=jnp.float32)

    @pl.when(k == pl.num_programs(1) - 1)
    def _():
        o_ref[...] = jnp.maximum(acc_ref[...] + b2_ref[...], 0.0).astype(o_ref.dtype)


# -----------------------------------------------------------------------------
# Wrapper
# -----------------------------------------------------------------------------
def expert_forward(x, w1, b1, w2, b2, *, block_m: int = 512,
                   hidden_block: int | None = None, weight_dtype=None):
    """Fused Expert forward.

    x:  (..., d_block)
    w1: (d_hidden, d_block), b1: (d_hidden,)   (PyTorch nn.Linear layout)
    w2: (d_block, d_hidden), b2: (d_block,)
    block_m:      row (token) tile size (rounded to 8 sublanes).
    hidden_block: force the hidden-streaming path with this hidden tile
                  (rounded to a multiple of 128). None -> auto.
    weight_dtype: e.g. jnp.bfloat16 on v6e/v7x (f32 accumulation kept).
    """
    *lead, d_block = x.shape
    d_hidden = w1.shape[0]
    assert w1.shape == (d_hidden, d_block)
    assert b1.shape == (d_hidden,)
    assert w2.shape == (d_block, d_hidden)
    assert b2.shape == (d_block,)

    m = int(math.prod(lead)) if lead else 1
    x2 = x.reshape(m, d_block)                     # contiguous collapse, no copy
    x_bytes = x2.dtype.itemsize
    w_dtype = jnp.dtype(weight_dtype) if weight_dtype is not None else jnp.dtype(w1.dtype)
    w_bytes = w_dtype.itemsize

    # ---- Lane padding of feature dims (weight-side only, exact) ------------
    db_pad = _round_up(d_block, 128)               # output lanes of 2nd matmul
    dh_pad = _round_up(d_hidden, 128)              # hidden lanes

    resident_w_bytes = (d_block * dh_pad + dh_pad * db_pad) * w_bytes
    stream = (hidden_block is not None) or resident_w_bytes > (16 << 20)
    if stream:
        th = _round_up(hidden_block if hidden_block is not None else 512, 128)
        th = min(th, dh_pad)
        dh_pad = _round_up(d_hidden, th)           # hidden axis divides exactly
    else:
        th = dh_pad

    # One-time weight layout prep (tiny matrices; no activation transposes).
    w1t = _pad2d(jnp.transpose(w1).astype(w_dtype), d_block, dh_pad)   # (d_block, dh_pad)
    b1r = _pad2d(b1.reshape(1, d_hidden).astype(jnp.float32), 1, dh_pad)
    w2t = _pad2d(jnp.transpose(w2).astype(w_dtype), dh_pad, db_pad)    # (dh_pad, db_pad)
    b2r = _pad2d(b2.reshape(1, d_block).astype(jnp.float32), 1, db_pad)

    # ---- Row tiling + VMEM budget ------------------------------------------
    tm = min(block_m, _round_up(m, 8))
    # Keep >= 2 row tiles when there is enough work so a 2-TC chip (v7x) can
    # shard the "parallel" row axis across both cores.
    if m >= 256 and _cdiv(m, tm) < 2:
        tm = _round_up(_cdiv(m, 2), 8)

    def vmem_need(tm_):
        need = 2 * tm_ * d_block * x_bytes + 2 * tm_ * db_pad * x_bytes  # x/out tiles
        if stream:
            need += 2 * (d_block * th + th * db_pad) * w_bytes           # streamed W tiles
            need += (2 * th + db_pad) * 4                                # bias tiles
            need += tm_ * db_pad * 4                                     # f32 acc scratch
            need += tm_ * th * 4                                         # hidden intermediate
        else:
            need += (d_block * dh_pad + dh_pad * db_pad) * w_bytes       # resident, Buffered(1)
            need += (dh_pad + db_pad) * 4
            need += tm_ * dh_pad * 4 + tm_ * db_pad * 4                  # h / y intermediates
        return need

    while tm > 64 and vmem_need(tm) > (48 << 20):
        tm = _round_up(tm // 2, 8)
    vmem_limit = int(min(max(1.5 * vmem_need(tm) + (2 << 20), 8 << 20), 64 << 20))

    grid_m = _cdiv(m, tm)                          # ragged final tile handled by Pallas
    out_shape = jax.ShapeDtypeStruct((m, db_pad), x.dtype)

    if not stream:
        out = pl.pallas_call(
            _expert_kernel_resident,
            out_shape=out_shape,
            grid_spec=pltpu.PrefetchScalarGridSpec(
                num_scalar_prefetch=0,
                grid=(grid_m,),
                in_specs=[
                    pl.BlockSpec((tm, d_block), lambda i: (i, 0)),          # x rows (streamed)
                    pl.BlockSpec((d_block, dh_pad), lambda i: (0, 0),
                                 pipeline_mode=pl.Buffered(1)),             # W1^T resident
                    pl.BlockSpec((1, dh_pad), lambda i: (0, 0),
                                 pipeline_mode=pl.Buffered(1)),             # b1 resident
                    pl.BlockSpec((dh_pad, db_pad), lambda i: (0, 0),
                                 pipeline_mode=pl.Buffered(1)),             # W2^T resident
                    pl.BlockSpec((1, db_pad), lambda i: (0, 0),
                                 pipeline_mode=pl.Buffered(1)),             # b2 resident
                ],
                out_specs=pl.BlockSpec((tm, db_pad), lambda i: (i, 0)),
            ),
            compiler_params=pltpu.CompilerParams(
                dimension_semantics=("parallel",),
                vmem_limit_bytes=vmem_limit,
            ),
        )(x2, w1t, b1r, w2t, b2r)
    else:
        nk = dh_pad // th
        out = pl.pallas_call(
            _expert_kernel_streamed,
            out_shape=out_shape,
            grid_spec=pltpu.PrefetchScalarGridSpec(
                num_scalar_prefetch=0,
                grid=(grid_m, nk),
                in_specs=[
                    pl.BlockSpec((tm, d_block), lambda i, k: (i, 0)),       # x rows
                    pl.BlockSpec((d_block, th), lambda i, k: (0, k)),       # W1^T hidden tile
                    pl.BlockSpec((1, th), lambda i, k: (0, k)),             # b1 hidden tile
                    pl.BlockSpec((th, db_pad), lambda i, k: (k, 0)),        # W2^T hidden tile
                    pl.BlockSpec((1, db_pad), lambda i, k: (0, 0),
                                 pipeline_mode=pl.Buffered(1)),             # b2 resident
                ],
                out_specs=pl.BlockSpec((tm, db_pad), lambda i, k: (i, 0)),
                scratch_shapes=[pltpu.VMEM((tm, db_pad), jnp.float32)],     # y accumulator
            ),
            compiler_params=pltpu.CompilerParams(
                dimension_semantics=("parallel", "arbitrary"),
                vmem_limit_bytes=vmem_limit,
            ),
        )(x2, w1t, b1r, w2t, b2r)

    if db_pad != d_block:
        out = out[:, :d_block]                    # drop zero-padded output lanes
    return out.reshape(*lead, d_block)


# -----------------------------------------------------------------------------
# Parameter init matching Expert.reset_parameters (U(-1/sqrt(in_f), 1/sqrt(in_f)))
# -----------------------------------------------------------------------------
def init_expert_params(key, d_block, moe_ratio=0.25, dtype=jnp.float32):
    d_hidden = int(d_block * moe_ratio)
    kw1, kb1, kw2, kb2 = jax.random.split(key, 4)

    bnd1 = 1.0 / math.sqrt(d_block)
    w1 = jax.random.uniform(kw1, (d_hidden, d_block), dtype=dtype, minval=-bnd1, maxval=bnd1)
    b1 = jax.random.uniform(kb1, (d_hidden,), dtype=dtype, minval=-bnd1, maxval=bnd1)

    bnd2 = 1.0 / math.sqrt(d_hidden)
    w2 = jax.random.uniform(kw2, (d_block, d_hidden), dtype=dtype, minval=-bnd2, maxval=bnd2)
    b2 = jax.random.uniform(kb2, (d_block,), dtype=dtype, minval=-bnd2, maxval=bnd2)
    return w1, b1, w2, b2


if __name__ == "__main__":
    key = jax.random.PRNGKey(0)
    hp = jax.lax.Precision.HIGHEST

    def reference(x, w1, b1, w2, b2):
        # Pure-JAX reference identical to the PyTorch forward (dropout p=0 -> id).
        h = jnp.maximum(jnp.einsum("...d,hd->...h", x, w1, precision=hp) + b1, 0.0)
        return jnp.maximum(jnp.einsum("...h,dh->...d", h, w2, precision=hp) + b2, 0.0)

    cases = [
        # (name, (B, S, d_block), moe_ratio, kwargs)
        ("resident", (2, 8, 32), 0.25, {}),                                   # module defaults
        ("streamed", (2, 8, 32), 0.25, {"hidden_block": 128}),                # forced fallback
        ("streamed-multitile", (2, 8, 128), 2.0, {"hidden_block": 128, "block_m": 8}),
    ]

    for idx, (name, (B, S, d_block), moe_ratio, kwargs) in enumerate(cases):
        k_x, k_p = jax.random.split(jax.random.fold_in(key, idx))
        x = jax.random.normal(k_x, (B, S, d_block), dtype=jnp.float32)
        w1, b1, w2, b2 = init_expert_params(k_p, d_block, moe_ratio)

        out = jax.block_until_ready(expert_forward(x, w1, b1, w2, b2, **kwargs))
        ref = reference(x, w1, b1, w2, b2)

        assert out.shape == x.shape, (name, out.shape)
        err = float(jnp.max(jnp.abs(out - ref)))
        assert jnp.allclose(out, ref, atol=1e-4, rtol=1e-4), (name, err)

    print("KERNEL_OK")
</pallas_src>

<mosaic_0001>
module attributes {stable_mosaic.version = 11 : i64} {
  func.func @_expert_kernel_resident(%arg0: i32, %arg1: memref<16x32xf32, #tpu.memory_space<vmem>>, %arg2: memref<32x128xf32, #tpu.memory_space<vmem>>, %arg3: memref<1x128xf32, #tpu.memory_space<vmem>>, %arg4: memref<128x128xf32, #tpu.memory_space<vmem>>, %arg5: memref<1x128xf32, #tpu.memory_space<vmem>>, %arg6: memref<16x128xf32, #tpu.memory_space<vmem>>) attributes {dimension_semantics = [#tpu.dimension_semantics<parallel>], iteration_bounds = array<i64: 1>, scalar_prefetch = 0 : i64, scratch_operands = 0 : i64, tpu.core_type = #tpu.core_type<tc>, window_params = [{transform_indices = @transform_0, window_bounds = array<i64: 16, 32>}, {pipeline_mode = #tpu.pipeline_mode<synchronous>, transform_indices = @transform_1, window_bounds = array<i64: 32, 128>}, {pipeline_mode = #tpu.pipeline_mode<synchronous>, transform_indices = @transform_2, window_bounds = array<i64: 1, 128>}, {pipeline_mode = #tpu.pipeline_mode<synchronous>, transform_indices = @transform_3, window_bounds = array<i64: 128, 128>}, {pipeline_mode = #tpu.pipeline_mode<synchronous>, transform_indices = @transform_4, window_bounds = array<i64: 1, 128>}, {transform_indices = @transform_5, window_bounds = array<i64: 16, 128>}]} {
    %c0 = arith.constant 0 : index
    %c0_0 = arith.constant 0 : index
    %0 = vector.load %arg1[%c0, %c0_0] : memref<16x32xf32, #tpu.memory_space<vmem>>, vector<16x32xf32>
    %c0_1 = arith.constant 0 : index
    %c0_2 = arith.constant 0 : index
    %1 = vector.load %arg2[%c0_1, %c0_2] : memref<32x128xf32, #tpu.memory_space<vmem>>, vector<32x128xf32>
    %cst = arith.constant dense<0.000000e+00> : vector<16x128xf32>
    %2 = tpu.matmul %0, %1, %cst {dimension_numbers = #tpu.dot_dimension_numbers<[1], [0], [0], [1], [0, 0, 1, 1], [], []>} : vector<16x32xf32>, vector<32x128xf32>, vector<16x128xf32> -> vector<16x128xf32>
    %c0_3 = arith.constant 0 : index
    %c0_4 = arith.constant 0 : index
    %3 = vector.load %arg3[%c0_3, %c0_4] : memref<1x128xf32, #tpu.memory_space<vmem>>, vector<1x128xf32>
    %4 = vector.broadcast %3 : vector<1x128xf32> to vector<16x128xf32>
    %5 = arith.addf %2, %4 : vector<16x128xf32>
    %cst_5 = arith.constant 0.000000e+00 : f32
    %6 = vector.broadcast %cst_5 : f32 to vector<16x128xf32>
    %7 = arith.maximumf %5, %6 : vector<16x128xf32>
    %c0_6 = arith.constant 0 : index
    %c0_7 = arith.constant 0 : index
    %8 = vector.load %arg4[%c0_6, %c0_7] : memref<128x128xf32, #tpu.memory_space<vmem>>, vector<128x128xf32>
    %cst_8 = arith.constant dense<0.000000e+00> : vector<16x128xf32>
    %9 = tpu.matmul %7, %8, %cst_8 {dimension_numbers = #tpu.dot_dimension_numbers<[1], [0], [0], [1], [0, 0, 1, 1], [], []>} : vector<16x128xf32>, vector<128x128xf32>, vector<16x128xf32> -> vector<16x128xf32>
    %c0_9 = arith.constant 0 : index
    %c0_10 = arith.constant 0 : index
    %10 = vector.load %arg5[%c0_9, %c0_10] : memref<1x128xf32, #tpu.memory_space<vmem>>, vector<1x128xf32>
    %11 = vector.broadcast %10 : vector<1x128xf32> to vector<16x128xf32>
    %12 = arith.addf %9, %11 : vector<16x128xf32>
    %cst_11 = arith.constant 0.000000e+00 : f32
    %13 = vector.broadcast %cst_11 : f32 to vector<16x128xf32>
    %14 = arith.maximumf %12, %13 : vector<16x128xf32>
    %c0_12 = arith.constant 0 : index
    %c0_13 = arith.constant 0 : index
    %15 = vector.load %arg6[%c0_12, %c0_13] : memref<16x128xf32, #tpu.memory_space<vmem>>, vector<16x128xf32>
    tpu.vector_store %arg6[%c0_12, %c0_13], %14 {strides = array<i32>} : memref<16x128xf32, #tpu.memory_space<vmem>>, vector<16x128xf32>,
    return
  }
  func.func @transform_0(%arg0: i32) -> (i32, i32) {
    %c0_i32 = arith.constant 0 : i32
    %c0_i32_0 = arith.constant 0 : i32
    return %arg0, %c0_i32 : i32, i32
  }
  func.func @transform_1(%arg0: i32) -> (i32, i32) {
    %c0_i32 = arith.constant 0 : i32
    %c0_i32_0 = arith.constant 0 : i32
    %c0_i32_1 = arith.constant 0 : i32
    return %c0_i32, %c0_i32_0 : i32, i32
  }
  func.func @transform_2(%arg0: i32) -> (i32, i32) {
    %c0_i32 = arith.constant 0 : i32
    %c0_i32_0 = arith.constant 0 : i32
    %c0_i32_1 = arith.constant 0 : i32
    return %c0_i32, %c0_i32_0 : i32, i32
  }
  func.func @transform_3(%arg0: i32) -> (i32, i32) {
    %c0_i32 = arith.constant 0 : i32
    %c0_i32_0 = arith.constant 0 : i32
    %c0_i32_1 = arith.constant 0 : i32
    return %c0_i32, %c0_i32_0 : i32, i32
  }
  func.func @transform_4(%arg0: i32) -> (i32, i32) {
    %c0_i32 = arith.constant 0 : i32
    %c0_i32_0 = arith.constant 0 : i32
    %c0_i32_1 = arith.constant 0 : i32
    return %c0_i32, %c0_i32_0 : i32, i32
  }
  func.func @transform_5(%arg0: i32) -> (i32, i32) {
    %c0_i32 = arith.constant 0 : i32
    %c0_i32_0 = arith.constant 0 : i32
    return %arg0, %c0_i32 : i32, i32
  }
}

</mosaic_0001>

<llo_original>
// kernel: tpu_custom_call.1
$region0: #{tpu_custom_call.1}
  #allocation0 [shape = 'u32[]', space=smem, size = 0x4, offset = 0x4, fixed_abs, tag = 'smem constant byte address 0x4 - core index']
  #allocation1 [shape = 'u32[144,128]{1,0:T(1,128)}', space=vmem, size = 0x12000, scoped, tag = 'internal scratch']
  %s0 = inlined_call_operand.hbm [shape: f32[16,32], index: 0, kind: input, shape index: {}]
  %s1 = inlined_call_operand.hbm [shape: f32[32,128], index: 1, kind: input, shape index: {}]
  %s2 = inlined_call_operand.vmem [shape: f32[1,128], index: 2, kind: input, shape index: {}]
  %s3 = inlined_call_operand.hbm [shape: f32[128,128], index: 3, kind: input, shape index: {}]
  %s4 = inlined_call_operand.vmem [shape: f32[1,128], index: 4, kind: input, shape index: {}]
  %s5 = inlined_call_operand.hbm [shape: f32[16,128], index: 5, kind: output, shape index: {}]
  %s6 = sld [smem:[#allocation0]]
  $region42: #{tpu_custom_call.1} parent=0
    _
  %s8 = ssub.s32 1, %s6
  %s9 = scalar_select 0, %s8, %s6
  $region1: #{tpu_custom_call.1} parent=0
    #allocation2 [shape = 'u8[8192]{0}', space=vmem, size = 0x2000, scoped, tag = 'input window, operand 0, single buffered']
    #allocation3 [shape = 's32[1]{0}', space=sflag, size = 0x4, scoped, tag = 'scoped memory for tpu_custom_call.1']
    #allocation4 [shape = 's32[1]{0}', space=sflag, size = 0x4, scoped, tag = 'scoped memory for tpu_custom_call.1']
    #allocation5 [shape = 'u8[16384]{0}', space=vmem, size = 0x4000, scoped, tag = 'input window, operand 1, single buffered']
    #allocation6 [shape = 's32[1]{0}', space=sflag, size = 0x4, scoped, tag = 'scoped memory for tpu_custom_call.1']
    #allocation7 [shape = 'u8[65536]{0}', space=vmem, size = 0x10000, scoped, tag = 'input window, operand 3, single buffered']
    #allocation8 [shape = 'u8[8192]{0}', space=vmem, size = 0x2000, scoped, tag = 'output window, operand 0, single buffered']
    %10 = vsyncpa [#allocation3], 0
    %11 = vsyncpa [#allocation6], 0
    %12 = vsyncpa [#allocation4], 0
    // Predicated region
    $region2: #{tpu_custom_call.1} parent=1 // pred_check
      _
    $region3: #{tpu_custom_call.1} parent=1 // pred_check_branch
      %14 = sbr.rel (0) target = $region5
    $region4: #{tpu_custom_call.1} parent=1 // pred_region
      %s16 = ssub.s32 256, 256
      %17 = vsyncadd [#allocation3], %s16
      %s18 = sshll.u32 [#allocation2], 4
      %s19 = int_to_ptr.vmem [resolvable:$true] %s18
      %24 = dma.hbm_to_vmem [thread:$0]  %s0, 256, %s19, [#allocation3], 128, 128, 8
    $region5: #{tpu_custom_call.1} parent=1 // pred_fallthru
      _
    // Predicated region
    $region6: #{tpu_custom_call.1} parent=1 // pred_check
      _
    $region7: #{tpu_custom_call.1} parent=1 // pred_check_branch
      %26 = sbr.rel (0) target = $region9
    $region8: #{tpu_custom_call.1} parent=1 // pred_region
      %s28 = ssub.s32 512, 512
      %29 = vsyncadd [#allocation6], %s28
      %s30 = sshll.u32 [#allocation5], 4
      %s31 = int_to_ptr.vmem [resolvable:$true] %s30
      %36 = dma.hbm_to_vmem [thread:$0]  %s1, 512, %s31, [#allocation6], 128, 128, 8
    $region9: #{tpu_custom_call.1} parent=1 // pred_fallthru
      _
    // Predicated region
    $region10: #{tpu_custom_call.1} parent=1 // pred_check
      _
    $region11: #{tpu_custom_call.1} parent=1 // pred_check_branch
      %38 = sbr.rel (0) target = $region13
    $region12: #{tpu_custom_call.1} parent=1 // pred_region
      _
    $region13: #{tpu_custom_call.1} parent=1 // pred_fallthru
      _
    // Predicated region
    $region14: #{tpu_custom_call.1} parent=1 // pred_check
      _
    $region15: #{tpu_custom_call.1} parent=1 // pred_check_branch
      %40 = sbr.rel (0) target = $region17
    $region16: #{tpu_custom_call.1} parent=1 // pred_region
      %s42 = ssub.s32 2048, 2048
      %43 = vsyncadd [#allocation6], %s42
      %s44 = sshll.u32 [#allocation7], 4
      %s45 = int_to_ptr.vmem [resolvable:$true] %s44
      %50 = dma.hbm_to_vmem [thread:$0]  %s3, 2048, %s45, [#allocation6], 128, 128, 8
    $region17: #{tpu_custom_call.1} parent=1 // pred_fallthru
      _
    // Predicated region
    $region18: #{tpu_custom_call.1} parent=1 // pred_check
      _
    $region19: #{tpu_custom_call.1} parent=1 // pred_check_branch
      %52 = sbr.rel (0) target = $region21
    $region20: #{tpu_custom_call.1} parent=1 // pred_region
      _
    $region21: #{tpu_custom_call.1} parent=1 // pred_fallthru
      _
    // Predicated region
    $region22: #{tpu_custom_call.1} parent=1 // pred_check
      _
    $region23: #{tpu_custom_call.1} parent=1 // pred_check_branch
      %54 = sbr.rel (0) target = $region25
    $region24: #{tpu_custom_call.1} parent=1 // pred_region
      %55 = dma.done [#allocation3], 256
    $region25: #{tpu_custom_call.1} parent=1 // pred_fallthru
      _
    // Predicated region
    $region26: #{tpu_custom_call.1} parent=1 // pred_check
      _
    $region27: #{tpu_custom_call.1} parent=1 // pred_check_branch
      %57 = sbr.rel (0) target = $region29
    $region28: #{tpu_custom_call.1} parent=1 // pred_region
      %58 = dma.done [#allocation6], 512
    $region29: #{tpu_custom_call.1} parent=1 // pred_fallthru
      _
    // Predicated region
    $region30: #{tpu_custom_call.1} parent=1 // pred_check
      _
    $region31: #{tpu_custom_call.1} parent=1 // pred_check_branch
      %60 = sbr.rel (0) target = $region33
    $region32: #{tpu_custom_call.1} parent=1 // pred_region
      %61 = dma.done [#allocation6], 2048
    $region33: #{tpu_custom_call.1} parent=1 // pred_fallthru
      _
    %v62 = vld [vmem:[#allocation2] sm:$0xff]
    %v63 = vld [vmem:[#allocation2 + $0x8] sm:$0xff]
    %v64 = vld [vmem:[#allocation5] sm:$0xff]
    %v65 = vld [vmem:[#allocation5 + $0x8] sm:$0xff]
    %v66 = vld [vmem:[#allocation5 + $0x10] sm:$0xff]
    %v67 = vld [vmem:[#allocation5 + $0x18] sm:$0xff]
    %v68 = vld [vmem:[%s2] sm:$0x1]
    %v70 = vlaneseq
    %v71 = vshrl.u32 %v70, 7
    %v72 = vsub.s32 0, %v71
    %v73 = vrot.slane %v68, %v72
    %vm75 = vcmask 261120
    %v77 = vsel %vm75, %v62, 0
    %v80 = vsel %vm75, %v63, 0
    %82 = vmatprep.subr.mxu0 0.0
    %83 = vmatpush1.msra.mxu0 %v64
    %84 = vmatprep.subr.mxu0 0.0
    %85 = vmatpush1.msra.mxu0 %v65
    %86 = vmatprep.subr.mxu0 0.0
    %87 = vmatpush1.msra.mxu0 %v66
    %88 = vmatprep.subr.mxu0 0.0
    %89 = vmatpush1.msra.mxu0 %v67
    %90 = vmatprep.subr.mxu0 0.0
    %91 = vmatpush1.msra.mxu0 0.0
    %92 = vmatprep.subr.mxu0 0.0
    %93 = vmatpush1.msra.mxu0 0.0
    %94 = vmatprep.subr.mxu0 0.0
    %95 = vmatpush1.msra.mxu0 0.0
    %96 = vmatprep.subr.mxu0 0.0
    %97 = vmatpush1.msra.mxu0 0.0
    %98 = vmatprep.subr.mxu0 0.0
    %99 = vmatpush1.msra.mxu0 0.0
    %100 = vmatprep.subr.mxu0 0.0
    %101 = vmatpush1.msra.mxu0 0.0
    %102 = vmatprep.subr.mxu0 0.0
    %103 = vmatpush1.msra.mxu0 0.0
    %104 = vmatprep.subr.mxu0 0.0
    %105 = vmatpush1.msra.mxu0 0.0
    %106 = vmatprep.subr.mxu0 0.0
    %107 = vmatpush1.msra.mxu0 0.0
    %108 = vmatprep.subr.mxu0 0.0
    %109 = vmatpush1.msra.mxu0 0.0
    %110 = vmatprep.subr.mxu0 0.0
    %111 = vmatpush1.msra.mxu0 0.0
    %112 = vmatprep.subr.mxu0 0.0
    %113 = vmatpush1.msra.mxu0 0.0
    %114 = vmatprep.subr.mxu0 0.0
    %115 = vmatpush1.msra.mxu0 0.0
    %116 = vmatprep.subr.mxu0 0.0
    %117 = vmatpush1.msra.mxu0 0.0
    %118 = vmatprep.subr.mxu0 0.0
    %119 = vmatpush1.msra.mxu0 0.0
    %120 = vmatprep.subr.mxu0 0.0
    %121 = vmatpush1.msra.mxu0 0.0
    %122 = vmatprep.subr.mxu0 0.0
    %123 = vmatpush1.msra.mxu0 0.0
    %124 = vmatprep.subr.mxu0 0.0
    %125 = vmatpush1.msra.mxu0 0.0
    %126 = vmatprep.subr.mxu0 0.0
    %127 = vmatpush1.msra.mxu0 0.0
    %128 = vmatprep.subr.mxu0 0.0
    %129 = vmatpush1.msra.mxu0 0.0
    %130 = vmatprep.subr.mxu0 0.0
    %131 = vmatpush1.msra.mxu0 0.0
    %132 = vmatprep.subr.mxu0 0.0
    %133 = vmatpush1.msra.mxu0 0.0
    %134 = vmatprep.subr.mxu0 0.0
    %135 = vmatpush1.msra.mxu0 0.0
    %136 = vmatprep.subr.mxu0 0.0
    %137 = vmatpush1.msra.mxu0 0.0
    %138 = vmatprep.subr.mxu0 0.0
    %139 = vmatpush1.msra.mxu0 0.0
    %140 = vmatprep.subr.mxu0 0.0
    %141 = vmatpush1.msra.mxu0 0.0
    %142 = vmatprep.subr.mxu0 0.0
    %143 = vmatpush1.msra.mxu0 0.0
    %144 = vmatprep.subr.mxu0 0.0
    %145 = vmatpush1.msra.mxu0 0.0
    %146 = vmatprep.mubr.f32.mxu0 0.0
    %147 = vmatmul.mubr.f32.gmra.mrb[0].mxu0 %v77
    %v148 = vpop.f32.mrb[0].mxu0
    %v149 = vadd.f32 %v73, %v148
    %v150 = vpop.f32.mrb[0].mxu0
    %151 = vmatprep.mubr.f32.mxu0 0.0
    %152 = vmatmul.mubr.f32.gmra.mrb[0].mxu0 %v80
    %v153 = vpop.f32.mrb[0].mxu0
    %v154 = vadd.f32 %v73, %v153
    %v155 = vpop.f32.mrb[0].mxu0
    %156 = vdwg.mxu0
    %v157 = vmax.f32 %v149, 0.0
    %v158 = vmax.f32 %v154, 0.0
    %v159 = vld [vmem:[#allocation7] sm:$0xff]
    %v160 = vld [vmem:[#allocation7 + $0x8] sm:$0xff]
    %v161 = vld [vmem:[#allocation7 + $0x10] sm:$0xff]
    %v162 = vld [vmem:[#allocation7 + $0x18] sm:$0xff]
    %v163 = vld [vmem:[#allocation7 + $0x20] sm:$0xff]
    %v164 = vld [vmem:[#allocation7 + $0x28] sm:$0xff]
    %v165 = vld [vmem:[#allocation7 + $0x30] sm:$0xff]
    %v166 = vld [vmem:[#allocation7 + $0x38] sm:$0xff]
    %v167 = vld [vmem:[#allocation7 + $0x40] sm:$0xff]
    %v168 = vld [vmem:[#allocation7 + $0x48] sm:$0xff]
    %v169 = vld [vmem:[#allocation7 + $0x50] sm:$0xff]
    %v170 = vld [vmem:[#allocation7 + $0x58] sm:$0xff]
    %v171 = vld [vmem:[#allocation7 + $0x60] sm:$0xff]
    %v172 = vld [vmem:[#allocation7 + $0x68] sm:$0xff]
    %v173 = vld [vmem:[#allocation7 + $0x70] sm:$0xff]
    %v174 = vld [vmem:[#allocation7 + $0x78] sm:$0xff]
    %v175 = vld [vmem:[%s4] sm:$0x1]
    %v177 = vlaneseq
    %v178 = vshrl.u32 %v177, 7
    %v179 = vsub.s32 0, %v178
    %v180 = vrot.slane %v175, %v179
    %182 = vmatprep.subr.mxu0 0.0
    %183 = vmatpush1.msra.mxu0 %v159
    %184 = vmatprep.subr.mxu0 0.0
    %185 = vmatpush1.msra.mxu0 %v160
    %186 = vmatprep.subr.mxu0 0.0
    %187 = vmatpush1.msra.mxu0 %v161
    %188 = vmatprep.subr.mxu0 0.0
    %189 = vmatpush1.msra.mxu0 %v162
    %190 = vmatprep.subr.mxu0 0.0
    %191 = vmatpush1.msra.mxu0 %v163
    %192 = vmatprep.subr.mxu0 0.0
    %193 = vmatpush1.msra.mxu0 %v164
    %194 = vmatprep.subr.mxu0 0.0
    %195 = vmatpush1.msra.mxu0 %v165
    %196 = vmatprep.subr.mxu0 0.0
    %197 = vmatpush1.msra.mxu0 %v166
    %198 = vmatprep.subr.mxu0 0.0
    %199 = vmatpush1.msra.mxu0 %v167
    %200 = vmatprep.subr.mxu0 0.0
    %201 = vmatpush1.msra.mxu0 %v168
    %202 = vmatprep.subr.mxu0 0.0
    %203 = vmatpush1.msra.mxu0 %v169
    %204 = vmatprep.subr.mxu0 0.0
    %205 = vmatpush1.msra.mxu0 %v170
    %206 = vmatprep.subr.mxu0 0.0
    %207 = vmatpush1.msra.mxu0 %v171
    %208 = vmatprep.subr.mxu0 0.0
    %209 = vmatpush1.msra.mxu0 %v172
    %210 = vmatprep.subr.mxu0 0.0
    %211 = vmatpush1.msra.mxu0 %v173
    %212 = vmatprep.subr.mxu0 0.0
    %213 = vmatpush1.msra.mxu0 %v174
    %214 = vmatprep.subr.mxu0 0.0
    %215 = vmatpush1.msra.mxu0 0.0
    %216 = vmatprep.subr.mxu0 0.0
    %217 = vmatpush1.msra.mxu0 0.0
    %218 = vmatprep.subr.mxu0 0.0
    %219 = vmatpush1.msra.mxu0 0.0
    %220 = vmatprep.subr.mxu0 0.0
    %221 = vmatpush1.msra.mxu0 0.0
    %222 = vmatprep.subr.mxu0 0.0
    %223 = vmatpush1.msra.mxu0 0.0
    %224 = vmatprep.subr.mxu0 0.0
    %225 = vmatpush1.msra.mxu0 0.0
    %226 = vmatprep.subr.mxu0 0.0
    %227 = vmatpush1.msra.mxu0 0.0
    %228 = vmatprep.subr.mxu0 0.0
    %229 = vmatpush1.msra.mxu0 0.0
    %230 = vmatprep.subr.mxu0 0.0
    %231 = vmatpush1.msra.mxu0 0.0
    %232 = vmatprep.subr.mxu0 0.0
    %233 = vmatpush1.msra.mxu0 0.0
    %234 = vmatprep.subr.mxu0 0.0
    %235 = vmatpush1.msra.mxu0 0.0
    %236 = vmatprep.subr.mxu0 0.0
    %237 = vmatpush1.msra.mxu0 0.0
    %238 = vmatprep.subr.mxu0 0.0
    %239 = vmatpush1.msra.mxu0 0.0
    %240 = vmatprep.subr.mxu0 0.0
    %241 = vmatpush1.msra.mxu0 0.0
    %242 = vmatprep.subr.mxu0 0.0
    %243 = vmatpush1.msra.mxu0 0.0
    %244 = vmatprep.subr.mxu0 0.0
    %245 = vmatpush1.msra.mxu0 0.0
    %246 = vmatprep.mubr.f32.mxu0 0.0
    %247 = vmatmul.mubr.f32.gmra.mrb[0].mxu0 %v157
    %v248 = vpop.f32.mrb[0].mxu0
    %v249 = vadd.f32 %v180, %v248
    %v250 = vpop.f32.mrb[0].mxu0
    %251 = vmatprep.mubr.f32.mxu0 0.0
    %252 = vmatmul.mubr.f32.gmra.mrb[0].mxu0 %v158
    %v253 = vpop.f32.mrb[0].mxu0
    %v254 = vadd.f32 %v180, %v253
    %v255 = vpop.f32.mrb[0].mxu0
    %256 = vdwg.mxu0
    %v257 = vmax.f32 %v249, 0.0
    %v258 = vmax.f32 %v254, 0.0
    %259 = vst [vmem:[#allocation8] sm:$0xff] %v257
    %260 = vst [vmem:[#allocation8 + $0x8] sm:$0xff] %v258
    // Predicated region
    $region34: #{tpu_custom_call.1} parent=1 // pred_check
      _
    $region35: #{tpu_custom_call.1} parent=1 // pred_check_branch
      %262 = sbr.rel (0) target = $region37
    $region36: #{tpu_custom_call.1} parent=1 // pred_region
      %s264 = ssub.s32 256, 256
      %265 = vsyncadd [#allocation4], %s264
      %s266 = sshll.u32 [#allocation8], 4
      %s267 = int_to_ptr.vmem [resolvable:$true] %s266
      %272 = dma.vmem_to_hbm [thread:$0]  %s267, 256, %s5, [#allocation4], 128, 128, 8
    $region37: #{tpu_custom_call.1} parent=1 // pred_fallthru
      _
    // Predicated region
    $region38: #{tpu_custom_call.1} parent=1 // pred_check
      _
    $region39: #{tpu_custom_call.1} parent=1 // pred_check_branch
      %274 = sbr.rel (0) target = $region41
    $region40: #{tpu_custom_call.1} parent=1 // pred_region
      %275 = dma.done [#allocation4], 256
    $region41: #{tpu_custom_call.1} parent=1 // pred_fallthru
      _
    %276 = vsyncpa [#allocation3], 1
    %277 = vsyncpa [#allocation6], 1
    %278 = vsyncpa [#allocation4], 1

</llo_original>
